<compile_context>
chip_gen: v7x
topology: tpu7x:2x2x1
jax: 0.10.0
libtpu: 0.0.40
codegen_flags: <defaults>
</compile_context>

<pallas_src>
import jax
import jax.numpy as jnp
from jax.experimental import pallas as pl
from jax.experimental.pallas import tpu as pltpu

OBS_DIM = 32          # flat vector obs space
HIDDEN = 64           # hidden_sizes = [64, 64]
ACT_DIM = 5           # Discrete action space, act_shape = 5
RECURRENT_N = 1
LN_EPS = 1e-5

QPAD = 64                  # q logits padded to 64 lanes
OUT_W = HIDDEN + QPAD      # 128-lane packed output: [h_new | q_padded]
VEC_W = 256                # packed bias/gain buffer lane width (multiple of 128)
VEC_ROWS = 16              # packed bias/gain buffer rows (multiple of 8)

# Row indices into the packed bias/gain buffer.
(_R_FNG, _R_FNB, _R_B1, _R_G1, _R_E1, _R_B2, _R_G2, _R_E2,
 _R_BI, _R_BH, _R_GG, _R_GB, _R_BO) = range(13)


def _round_up(n, m):
    return pl.cdiv(n, m) * m


def _layernorm(x, g, b):
    mu = jnp.mean(x, axis=-1, keepdims=True)
    var = jnp.mean(jnp.square(x - mu), axis=-1, keepdims=True)
    return (x - mu) * jax.lax.rsqrt(var + LN_EPS) * g + b


def _qactor_kernel(obs_ref, h0_ref, w1_ref, w2_ref, wi_ref, wh_ref, wo_ref, vec_ref,
                   out_ref):
    f32 = jnp.float32
    bf16 = jnp.bfloat16
    v = vec_ref
    H = HIDDEN

    # --- MLPBase: feature LayerNorm ------------------------------------------------
    x = _layernorm(obs_ref[...],
                   v[_R_FNG:_R_FNG + 1, :OBS_DIM], v[_R_FNB:_R_FNB + 1, :OBS_DIM])

    # --- MLPLayer: [Linear -> ReLU -> LayerNorm] x 2 (bf16 MXU, f32 accumulate) -----
    h = jnp.dot(x.astype(bf16), w1_ref[...], preferred_element_type=f32) \
        + v[_R_B1:_R_B1 + 1, :H]
    h = _layernorm(jnp.maximum(h, 0.0), v[_R_G1:_R_G1 + 1, :H], v[_R_E1:_R_E1 + 1, :H])

    h = jnp.dot(h.astype(bf16), w2_ref[...], preferred_element_type=f32) \
        + v[_R_B2:_R_B2 + 1, :H]
    h = _layernorm(jnp.maximum(h, 0.0), v[_R_G2:_R_G2 + 1, :H], v[_R_E2:_R_E2 + 1, :H])

    # --- RNNLayer: single GRU step; six gate matmuls fused into two (·,192) dots ----
    h_prev = h0_ref[...]                       # already multiplied by masks in wrapper
    gi = jnp.dot(h.astype(bf16), wi_ref[...], preferred_element_type=f32) \
        + v[_R_BI:_R_BI + 1, :3 * H]
    gh = jnp.dot(h_prev.astype(bf16), wh_ref[...], preferred_element_type=f32) \
        + v[_R_BH:_R_BH + 1, :3 * H]
    r = jax.nn.sigmoid(gi[:, 0 * H:1 * H] + gh[:, 0 * H:1 * H])
    z = jax.nn.sigmoid(gi[:, 1 * H:2 * H] + gh[:, 1 * H:2 * H])
    n = jnp.tanh(gi[:, 2 * H:3 * H] + r * gh[:, 2 * H:3 * H])
    h_new = (1.0 - z) * n + z * h_prev         # carried rnn_state (raw, no LayerNorm)

    # RNNLayer normalizes the features it returns; the carried state stays raw.
    feat = _layernorm(h_new, v[_R_GG:_R_GG + 1, :H], v[_R_GB:_R_GB + 1, :H])

    # --- out head: Linear(hidden, act_shape), padded to 64 output lanes -------------
    q = jnp.dot(feat.astype(bf16), wo_ref[...], preferred_element_type=f32) \
        + v[_R_BO:_R_BO + 1, :QPAD]

    # Lane-dense packed output slab: [h_new (64 lanes) | q_padded (64 lanes)] = 128.
    out_ref[...] = jnp.concatenate([h_new, q], axis=-1)


def _pack_params(p):
    """Pack natural ([in,out]-transposed) params into the kernel's fused layout:
    bf16 weight matrices + one f32 bias/gain buffer."""
    bf16 = jnp.bfloat16
    w1 = p["w1"].astype(bf16)                                                   # (32, 64)
    w2 = p["w2"].astype(bf16)                                                   # (64, 64)
    wi = jnp.concatenate([p["wir"], p["wiz"], p["win"]], axis=-1).astype(bf16)  # (64, 192)
    wh = jnp.concatenate([p["whr"], p["whz"], p["whn"]], axis=-1).astype(bf16)  # (64, 192)
    wo = jnp.pad(p["wo"], ((0, 0), (0, QPAD - ACT_DIM))).astype(bf16)           # (64, 64)

    def row(v):
        v = jnp.asarray(v, jnp.float32).reshape(1, -1)
        return jnp.pad(v, ((0, 0), (0, VEC_W - v.shape[1])))

    rows = [
        row(p["fn_g"]), row(p["fn_b"]),
        row(p["b1"]), row(p["g1"]), row(p["e1"]),
        row(p["b2"]), row(p["g2"]), row(p["e2"]),
        row(jnp.concatenate([p["bir"], p["biz"], p["bin"]], axis=-1)),
        row(jnp.concatenate([p["bhr"], p["bhz"], p["bhn"]], axis=-1)),
        row(p["gg"]), row(p["gb"]),
        row(jnp.pad(p["bo"], ((0, 0), (0, QPAD - ACT_DIM)))),
    ]
    rows += [jnp.zeros((1, VEC_W), jnp.float32)] * (VEC_ROWS - len(rows))
    vecs = jnp.concatenate(rows, axis=0)                                        # (16, 256)
    return w1, w2, wi, wh, wo, vecs


def _choose_tile(batch):
    # Big tiles amortize the ~0.35us per-grid-step overhead and fill the MXU's M
    # dimension; keep >=2 grid steps when the batch allows so v7x's two TensorCores
    # both receive work through "parallel" dimension semantics.
    tb = _round_up(pl.cdiv(batch, 2), 8)
    return int(max(8, min(512, tb)))


def qactor_forward(params, obs, rnn_states, masks, t=0,
                   epsilon_start=1.0, epsilon_finish=0.05, epsilon_anneal_time=100000,
                   tile_b=None):
    B = obs.shape[0]
    TB = tile_b if tile_b is not None else _choose_tile(B)
    Bp = _round_up(B, TB)
    pad = Bp - B

    # Pre-multiply masks into the hidden state (one fused XLA op) and pad the batch.
    h0 = rnn_states.reshape(B, HIDDEN) * masks
    obs_p = jnp.pad(obs, ((0, pad), (0, 0))) if pad else obs
    h0_p = jnp.pad(h0, ((0, pad), (0, 0))) if pad else h0

    w1, w2, wi, wh, wo, vecs = _pack_params(params)

    def row_spec(d):
        return pl.BlockSpec((TB, d), lambda i: (i, 0))

    def full_spec(a):
        return pl.BlockSpec(a.shape, lambda i: (0, 0))

    out = pl.pallas_call(
        _qactor_kernel,
        out_shape=jax.ShapeDtypeStruct((Bp, OUT_W), jnp.float32),
        grid=(Bp // TB,),
        in_specs=[row_spec(OBS_DIM), row_spec(HIDDEN),
                  full_spec(w1), full_spec(w2), full_spec(wi), full_spec(wh),
                  full_spec(wo), full_spec(vecs)],
        out_specs=row_spec(OUT_W),
        compiler_params=pltpu.CompilerParams(dimension_semantics=("parallel",)),
    )(obs_p, h0_p, w1, w2, wi, wh, wo, vecs)

    h_new = out[:B, :HIDDEN]
    q = out[:B, HIDDEN:HIDDEN + ACT_DIM]

    # OneHotEpsilonGreedy epsilon schedule (host-side scalar glue; do not jit with a
    # traced `t`).
    delta = (epsilon_start - epsilon_finish) / epsilon_anneal_time
    epsilon = max(epsilon_finish, epsilon_start - delta * t)
    # TODO(synk): OneHotEpsilonGreedy is a torch.distributions-style sampling object;
    # we return its raw q-value logits plus epsilon instead of a distribution object.
    return q, h_new.reshape(B, RECURRENT_N, HIDDEN), epsilon


def _reference_forward(params, obs, rnn_states, masks):
    """Pure-JAX reference with matching numerics (bf16 MXU inputs, f32 accumulation)."""
    p = params
    bf16 = jnp.bfloat16

    def mm(a, w):
        return jnp.dot(a.astype(bf16), w.astype(bf16), preferred_element_type=jnp.float32)

    x = _layernorm(obs, p["fn_g"], p["fn_b"])
    h = _layernorm(jnp.maximum(mm(x, p["w1"]) + p["b1"], 0.0), p["g1"], p["e1"])
    h = _layernorm(jnp.maximum(mm(h, p["w2"]) + p["b2"], 0.0), p["g2"], p["e2"])
    h_prev = rnn_states.reshape(-1, HIDDEN) * masks
    r = jax.nn.sigmoid(mm(h, p["wir"]) + p["bir"] + mm(h_prev, p["whr"]) + p["bhr"])
    z = jax.nn.sigmoid(mm(h, p["wiz"]) + p["biz"] + mm(h_prev, p["whz"]) + p["bhz"])
    n = jnp.tanh(mm(h, p["win"]) + p["bin"] + r * (mm(h_prev, p["whn"]) + p["bhn"]))
    h_new = (1.0 - z) * n + z * h_prev
    feat = _layernorm(h_new, p["gg"], p["gb"])
    q = mm(feat, p["wo"]) + p["bo"]
    return q, h_new.reshape(-1, RECURRENT_N, HIDDEN)


def init_params(key):
    """Deterministic synthetic parameters (shapes from QActor.__init__)."""
    ks = jax.random.split(key, 12)

    def w(k, fan_in, fan_out):
        return jax.random.normal(k, (fan_in, fan_out), jnp.float32) / jnp.sqrt(
            jnp.asarray(fan_in, jnp.float32))

    z1 = lambda d: jnp.zeros((1, d), jnp.float32)
    o1 = lambda d: jnp.ones((1, d), jnp.float32)

    return {
        "fn_g": o1(OBS_DIM), "fn_b": z1(OBS_DIM),
        "w1": w(ks[0], OBS_DIM, HIDDEN), "b1": z1(HIDDEN),
        "g1": o1(HIDDEN), "e1": z1(HIDDEN),
        "w2": w(ks[1], HIDDEN, HIDDEN), "b2": z1(HIDDEN),
        "g2": o1(HIDDEN), "e2": z1(HIDDEN),
        "wir": w(ks[2], HIDDEN, HIDDEN), "wiz": w(ks[3], HIDDEN, HIDDEN),
        "win": w(ks[4], HIDDEN, HIDDEN),
        "whr": w(ks[5], HIDDEN, HIDDEN), "whz": w(ks[6], HIDDEN, HIDDEN),
        "whn": w(ks[7], HIDDEN, HIDDEN),
        "bir": z1(HIDDEN), "biz": z1(HIDDEN), "bin": z1(HIDDEN),
        "bhr": z1(HIDDEN), "bhz": z1(HIDDEN), "bhn": z1(HIDDEN),
        "gg": o1(HIDDEN), "gb": z1(HIDDEN),
        "wo": w(ks[8], HIDDEN, ACT_DIM), "bo": z1(ACT_DIM),  # out bias init = constant 0
    }


if __name__ == "__main__":
    key = jax.random.PRNGKey(0)
    k_obs, k_rnn, k_params = jax.random.split(key, 3)

    B = 16
    obs = jax.random.normal(k_obs, (B, OBS_DIM), jnp.float32)
    rnn_states = jax.random.normal(k_rnn, (B, RECURRENT_N, HIDDEN), jnp.float32)
    masks = jnp.concatenate(
        [jnp.ones((B // 2, 1), jnp.float32), jnp.zeros((B // 2, 1), jnp.float32)], axis=0)

    params = init_params(k_params)

    q_values, new_rnn_states, epsilon = qactor_forward(params, obs, rnn_states, masks, t=1000)
    jax.block_until_ready((q_values, new_rnn_states))

    q_ref, h_ref = _reference_forward(params, obs, rnn_states, masks)
    assert q_values.shape == (B, ACT_DIM)
    assert new_rnn_states.shape == (B, RECURRENT_N, HIDDEN)
    assert jnp.allclose(q_values, q_ref, atol=2e-3, rtol=2e-3)
    assert jnp.allclose(new_rnn_states, h_ref, atol=2e-3, rtol=2e-3)
    assert 0.05 <= epsilon <= 1.0

    print("KERNEL_OK")
</pallas_src>

<mosaic_0001>
module attributes {stable_mosaic.version = 11 : i64} {
  func.func @_qactor_kernel(%arg0: i32, %arg1: memref<8x32xf32, #tpu.memory_space<vmem>>, %arg2: memref<8x64xf32, #tpu.memory_space<vmem>>, %arg3: memref<32x64xbf16, #tpu.memory_space<vmem>>, %arg4: memref<64x64xbf16, #tpu.memory_space<vmem>>, %arg5: memref<64x192xbf16, #tpu.memory_space<vmem>>, %arg6: memref<64x192xbf16, #tpu.memory_space<vmem>>, %arg7: memref<64x64xbf16, #tpu.memory_space<vmem>>, %arg8: memref<16x256xf32, #tpu.memory_space<vmem>>, %arg9: memref<8x128xf32, #tpu.memory_space<vmem>>) attributes {dimension_semantics = [#tpu.dimension_semantics<parallel>], iteration_bounds = array<i64: 2>, scalar_prefetch = 0 : i64, scratch_operands = 0 : i64, tpu.core_type = #tpu.core_type<tc>, window_params = [{transform_indices = @transform_0, window_bounds = array<i64: 8, 32>}, {transform_indices = @transform_1, window_bounds = array<i64: 8, 64>}, {pipeline_mode = #tpu.pipeline_mode<synchronous>, transform_indices = @transform_2, window_bounds = array<i64: 32, 64>}, {pipeline_mode = #tpu.pipeline_mode<synchronous>, transform_indices = @transform_3, window_bounds = array<i64: 64, 64>}, {pipeline_mode = #tpu.pipeline_mode<synchronous>, transform_indices = @transform_4, window_bounds = array<i64: 64, 192>}, {pipeline_mode = #tpu.pipeline_mode<synchronous>, transform_indices = @transform_5, window_bounds = array<i64: 64, 192>}, {pipeline_mode = #tpu.pipeline_mode<synchronous>, transform_indices = @transform_6, window_bounds = array<i64: 64, 64>}, {pipeline_mode = #tpu.pipeline_mode<synchronous>, transform_indices = @transform_7, window_bounds = array<i64: 16, 256>}, {transform_indices = @transform_8, window_bounds = array<i64: 8, 128>}]} {
    %c0 = arith.constant 0 : index
    %c0_0 = arith.constant 0 : index
    %0 = vector.load %arg1[%c0, %c0_0] : memref<8x32xf32, #tpu.memory_space<vmem>>, vector<8x32xf32>
    %c0_1 = arith.constant 0 : index
    %c0_2 = arith.constant 0 : index
    %1 = vector.load %arg8[%c0_1, %c0_2] : memref<16x256xf32, #tpu.memory_space<vmem>>, vector<1x32xf32>
    %c1 = arith.constant 1 : index
    %c0_3 = arith.constant 0 : index
    %2 = vector.load %arg8[%c1, %c0_3] : memref<16x256xf32, #tpu.memory_space<vmem>>, vector<1x32xf32>
    %cst = arith.constant dense<0.000000e+00> : vector<8xf32>
    %3 = vector.multi_reduction <add>, %0, %cst [1] : vector<8x32xf32> to vector<8xf32>
    %4 = vector.shape_cast %3 : vector<8xf32> to vector<8x1xf32>
    %cst_4 = arith.constant 3.200000e+01 : f32
    %5 = vector.broadcast %cst_4 : f32 to vector<8x1xf32>
    %6 = arith.divf %4, %5 : vector<8x1xf32>
    %7 = vector.broadcast %6 : vector<8x1xf32> to vector<8x32xf32>
    %8 = arith.subf %0, %7 : vector<8x32xf32>
    %9 = arith.mulf %8, %8 : vector<8x32xf32>
    %cst_5 = arith.constant dense<0.000000e+00> : vector<8xf32>
    %10 = vector.multi_reduction <add>, %9, %cst_5 [1] : vector<8x32xf32> to vector<8xf32>
    %11 = vector.shape_cast %10 : vector<8xf32> to vector<8x1xf32>
    %cst_6 = arith.constant 3.200000e+01 : f32
    %12 = vector.broadcast %cst_6 : f32 to vector<8x1xf32>
    %13 = arith.divf %11, %12 : vector<8x1xf32>
    %14 = vector.broadcast %6 : vector<8x1xf32> to vector<8x32xf32>
    %15 = arith.subf %0, %14 : vector<8x32xf32>
    %cst_7 = arith.constant 9.99999974E-6 : f32
    %16 = vector.broadcast %cst_7 : f32 to vector<8x1xf32>
    %17 = arith.addf %13, %16 : vector<8x1xf32>
    %18 = math.rsqrt %17 : vector<8x1xf32>
    %19 = vector.broadcast %18 : vector<8x1xf32> to vector<8x32xf32>
    %20 = arith.mulf %15, %19 : vector<8x32xf32>
    %21 = vector.broadcast %1 : vector<1x32xf32> to vector<8x32xf32>
    %22 = arith.mulf %20, %21 : vector<8x32xf32>
    %23 = vector.broadcast %2 : vector<1x32xf32> to vector<8x32xf32>
    %24 = arith.addf %22, %23 : vector<8x32xf32>
    %25 = arith.truncf %24 : vector<8x32xf32> to vector<8x32xbf16>
    %c0_8 = arith.constant 0 : index
    %c0_9 = arith.constant 0 : index
    %26 = vector.load %arg3[%c0_8, %c0_9] : memref<32x64xbf16, #tpu.memory_space<vmem>>, vector<32x64xbf16>
    %cst_10 = arith.constant dense<0.000000e+00> : vector<8x64xf32>
    %27 = tpu.matmul %25, %26, %cst_10 {dimension_numbers = #tpu.dot_dimension_numbers<[1], [0], [0], [1], [0, 0, 1, 1], [], []>} : vector<8x32xbf16>, vector<32x64xbf16>, vector<8x64xf32> -> vector<8x64xf32>
    %c2 = arith.constant 2 : index
    %c0_11 = arith.constant 0 : index
    %28 = vector.load %arg8[%c2, %c0_11] : memref<16x256xf32, #tpu.memory_space<vmem>>, vector<1x64xf32>
    %29 = vector.broadcast %28 : vector<1x64xf32> to vector<8x64xf32>
    %30 = arith.addf %27, %29 : vector<8x64xf32>
    %cst_12 = arith.constant 0.000000e+00 : f32
    %31 = vector.broadcast %cst_12 : f32 to vector<8x64xf32>
    %32 = arith.maximumf %30, %31 : vector<8x64xf32>
    %c3 = arith.constant 3 : index
    %c0_13 = arith.constant 0 : index
    %33 = vector.load %arg8[%c3, %c0_13] : memref<16x256xf32, #tpu.memory_space<vmem>>, vector<1x64xf32>
    %c4 = arith.constant 4 : index
    %c0_14 = arith.constant 0 : index
    %34 = vector.load %arg8[%c4, %c0_14] : memref<16x256xf32, #tpu.memory_space<vmem>>, vector<1x64xf32>
    %cst_15 = arith.constant dense<0.000000e+00> : vector<8xf32>
    %35 = vector.multi_reduction <add>, %32, %cst_15 [1] : vector<8x64xf32> to vector<8xf32>
    %36 = vector.shape_cast %35 : vector<8xf32> to vector<8x1xf32>
    %cst_16 = arith.constant 6.400000e+01 : f32
    %37 = vector.broadcast %cst_16 : f32 to vector<8x1xf32>
    %38 = arith.divf %36, %37 : vector<8x1xf32>
    %39 = vector.broadcast %38 : vector<8x1xf32> to vector<8x64xf32>
    %40 = arith.subf %32, %39 : vector<8x64xf32>
    %41 = arith.mulf %40, %40 : vector<8x64xf32>
    %cst_17 = arith.constant dense<0.000000e+00> : vector<8xf32>
    %42 = vector.multi_reduction <add>, %41, %cst_17 [1] : vector<8x64xf32> to vector<8xf32>
    %43 = vector.shape_cast %42 : vector<8xf32> to vector<8x1xf32>
    %cst_18 = arith.constant 6.400000e+01 : f32
    %44 = vector.broadcast %cst_18 : f32 to vector<8x1xf32>
    %45 = arith.divf %43, %44 : vector<8x1xf32>
    %46 = vector.broadcast %38 : vector<8x1xf32> to vector<8x64xf32>
    %47 = arith.subf %32, %46 : vector<8x64xf32>
    %cst_19 = arith.constant 9.99999974E-6 : f32
    %48 = vector.broadcast %cst_19 : f32 to vector<8x1xf32>
    %49 = arith.addf %45, %48 : vector<8x1xf32>
    %50 = math.rsqrt %49 : vector<8x1xf32>
    %51 = vector.broadcast %50 : vector<8x1xf32> to vector<8x64xf32>
    %52 = arith.mulf %47, %51 : vector<8x64xf32>
    %53 = vector.broadcast %33 : vector<1x64xf32> to vector<8x64xf32>
    %54 = arith.mulf %52, %53 : vector<8x64xf32>
    %55 = vector.broadcast %34 : vector<1x64xf32> to vector<8x64xf32>
    %56 = arith.addf %54, %55 : vector<8x64xf32>
    %57 = arith.truncf %56 : vector<8x64xf32> to vector<8x64xbf16>
    %c0_20 = arith.constant 0 : index
    %c0_21 = arith.constant 0 : index
    %58 = vector.load %arg4[%c0_20, %c0_21] : memref<64x64xbf16, #tpu.memory_space<vmem>>, vector<64x64xbf16>
    %cst_22 = arith.constant dense<0.000000e+00> : vector<8x64xf32>
    %59 = tpu.matmul %57, %58, %cst_22 {dimension_numbers = #tpu.dot_dimension_numbers<[1], [0], [0], [1], [0, 0, 1, 1], [], []>} : vector<8x64xbf16>, vector<64x64xbf16>, vector<8x64xf32> -> vector<8x64xf32>
    %c5 = arith.constant 5 : index
    %c0_23 = arith.constant 0 : index
    %60 = vector.load %arg8[%c5, %c0_23] : memref<16x256xf32, #tpu.memory_space<vmem>>, vector<1x64xf32>
    %61 = vector.broadcast %60 : vector<1x64xf32> to vector<8x64xf32>
    %62 = arith.addf %59, %61 : vector<8x64xf32>
    %cst_24 = arith.constant 0.000000e+00 : f32
    %63 = vector.broadcast %cst_24 : f32 to vector<8x64xf32>
    %64 = arith.maximumf %62, %63 : vector<8x64xf32>
    %c6 = arith.constant 6 : index
    %c0_25 = arith.constant 0 : index
    %65 = vector.load %arg8[%c6, %c0_25] : memref<16x256xf32, #tpu.memory_space<vmem>>, vector<1x64xf32>
    %c7 = arith.constant 7 : index
    %c0_26 = arith.constant 0 : index
    %66 = vector.load %arg8[%c7, %c0_26] : memref<16x256xf32, #tpu.memory_space<vmem>>, vector<1x64xf32>
    %cst_27 = arith.constant dense<0.000000e+00> : vector<8xf32>
    %67 = vector.multi_reduction <add>, %64, %cst_27 [1] : vector<8x64xf32> to vector<8xf32>
    %68 = vector.shape_cast %67 : vector<8xf32> to vector<8x1xf32>
    %cst_28 = arith.constant 6.400000e+01 : f32
    %69 = vector.broadcast %cst_28 : f32 to vector<8x1xf32>
    %70 = arith.divf %68, %69 : vector<8x1xf32>
    %71 = vector.broadcast %70 : vector<8x1xf32> to vector<8x64xf32>
    %72 = arith.subf %64, %71 : vector<8x64xf32>
    %73 = arith.mulf %72, %72 : vector<8x64xf32>
    %cst_29 = arith.constant dense<0.000000e+00> : vector<8xf32>
    %74 = vector.multi_reduction <add>, %73, %cst_29 [1] : vector<8x64xf32> to vector<8xf32>
    %75 = vector.shape_cast %74 : vector<8xf32> to vector<8x1xf32>
    %cst_30 = arith.constant 6.400000e+01 : f32
    %76 = vector.broadcast %cst_30 : f32 to vector<8x1xf32>
    %77 = arith.divf %75, %76 : vector<8x1xf32>
    %78 = vector.broadcast %70 : vector<8x1xf32> to vector<8x64xf32>
    %79 = arith.subf %64, %78 : vector<8x64xf32>
    %cst_31 = arith.constant 9.99999974E-6 : f32
    %80 = vector.broadcast %cst_31 : f32 to vector<8x1xf32>
    %81 = arith.addf %77, %80 : vector<8x1xf32>
    %82 = math.rsqrt %81 : vector<8x1xf32>
    %83 = vector.broadcast %82 : vector<8x1xf32> to vector<8x64xf32>
    %84 = arith.mulf %79, %83 : vector<8x64xf32>
    %85 = vector.broadcast %65 : vector<1x64xf32> to vector<8x64xf32>
    %86 = arith.mulf %84, %85 : vector<8x64xf32>
    %87 = vector.broadcast %66 : vector<1x64xf32> to vector<8x64xf32>
    %88 = arith.addf %86, %87 : vector<8x64xf32>
    %c0_32 = arith.constant 0 : index
    %c0_33 = arith.constant 0 : index
    %89 = vector.load %arg2[%c0_32, %c0_33] : memref<8x64xf32, #tpu.memory_space<vmem>>, vector<8x64xf32>
    %90 = arith.truncf %88 : vector<8x64xf32> to vector<8x64xbf16>
    %c0_34 = arith.constant 0 : index
    %c0_35 = arith.constant 0 : index
    %91 = vector.load %arg5[%c0_34, %c0_35] : memref<64x192xbf16, #tpu.memory_space<vmem>>, vector<64x192xbf16>
    %cst_36 = arith.constant dense<0.000000e+00> : vector<8x192xf32>
    %92 = tpu.matmul %90, %91, %cst_36 {dimension_numbers = #tpu.dot_dimension_numbers<[1], [0], [0], [1], [0, 0, 1, 1], [], []>} : vector<8x64xbf16>, vector<64x192xbf16>, vector<8x192xf32> -> vector<8x192xf32>
    %c8 = arith.constant 8 : index
    %c0_37 = arith.constant 0 : index
    %93 = vector.load %arg8[%c8, %c0_37] : memref<16x256xf32, #tpu.memory_space<vmem>>, vector<1x192xf32>
    %94 = vector.broadcast %93 : vector<1x192xf32> to vector<8x192xf32>
    %95 = arith.addf %92, %94 : vector<8x192xf32>
    %96 = arith.truncf %89 : vector<8x64xf32> to vector<8x64xbf16>
    %c0_38 = arith.constant 0 : index
    %c0_39 = arith.constant 0 : index
    %97 = vector.load %arg6[%c0_38, %c0_39] : memref<64x192xbf16, #tpu.memory_space<vmem>>, vector<64x192xbf16>
    %cst_40 = arith.constant dense<0.000000e+00> : vector<8x192xf32>
    %98 = tpu.matmul %96, %97, %cst_40 {dimension_numbers = #tpu.dot_dimension_numbers<[1], [0], [0], [1], [0, 0, 1, 1], [], []>} : vector<8x64xbf16>, vector<64x192xbf16>, vector<8x192xf32> -> vector<8x192xf32>
    %c9 = arith.constant 9 : index
    %c0_41 = arith.constant 0 : index
    %99 = vector.load %arg8[%c9, %c0_41] : memref<16x256xf32, #tpu.memory_space<vmem>>, vector<1x192xf32>
    %100 = vector.broadcast %99 : vector<1x192xf32> to vector<8x192xf32>
    %101 = arith.addf %98, %100 : vector<8x192xf32>
    %102 = vector.extract_strided_slice %95 {offsets = [0, 0], sizes = [8, 64], strides = [1, 1]} : vector<8x192xf32> to vector<8x64xf32>
    %103 = vector.extract_strided_slice %101 {offsets = [0, 0], sizes = [8, 64], strides = [1, 1]} : vector<8x192xf32> to vector<8x64xf32>
    %104 = arith.addf %102, %103 : vector<8x64xf32>
    %105 = arith.negf %104 : vector<8x64xf32>
    %106 = math.exp %105 : vector<8x64xf32>
    %cst_42 = arith.constant 1.000000e+00 : f32
    %107 = vector.broadcast %cst_42 : f32 to vector<8x64xf32>
    %108 = arith.addf %107, %106 : vector<8x64xf32>
    %109 = arith.divf %107, %108 : vector<8x64xf32>
    %110 = vector.extract_strided_slice %95 {offsets = [0, 64], sizes = [8, 64], strides = [1, 1]} : vector<8x192xf32> to vector<8x64xf32>
    %111 = vector.extract_strided_slice %101 {offsets = [0, 64], sizes = [8, 64], strides = [1, 1]} : vector<8x192xf32> to vector<8x64xf32>
    %112 = arith.addf %110, %111 : vector<8x64xf32>
    %113 = arith.negf %112 : vector<8x64xf32>
    %114 = math.exp %113 : vector<8x64xf32>
    %cst_43 = arith.constant 1.000000e+00 : f32
    %115 = vector.broadcast %cst_43 : f32 to vector<8x64xf32>
    %116 = arith.addf %115, %114 : vector<8x64xf32>
    %117 = arith.divf %115, %116 : vector<8x64xf32>
    %118 = vector.extract_strided_slice %95 {offsets = [0, 128], sizes = [8, 64], strides = [1, 1]} : vector<8x192xf32> to vector<8x64xf32>
    %119 = vector.extract_strided_slice %101 {offsets = [0, 128], sizes = [8, 64], strides = [1, 1]} : vector<8x192xf32> to vector<8x64xf32>
    %120 = arith.mulf %109, %119 : vector<8x64xf32>
    %121 = arith.addf %118, %120 : vector<8x64xf32>
    %122 = math.tanh %121 : vector<8x64xf32>
    %cst_44 = arith.constant 1.000000e+00 : f32
    %123 = vector.broadcast %cst_44 : f32 to vector<8x64xf32>
    %124 = arith.subf %123, %117 : vector<8x64xf32>
    %125 = arith.mulf %124, %122 : vector<8x64xf32>
    %126 = arith.mulf %117, %89 : vector<8x64xf32>
    %127 = arith.addf %125, %126 : vector<8x64xf32>
    %c10 = arith.constant 10 : index
    %c0_45 = arith.constant 0 : index
    %128 = vector.load %arg8[%c10, %c0_45] : memref<16x256xf32, #tpu.memory_space<vmem>>, vector<1x64xf32>
    %c11 = arith.constant 11 : index
    %c0_46 = arith.constant 0 : index
    %129 = vector.load %arg8[%c11, %c0_46] : memref<16x256xf32, #tpu.memory_space<vmem>>, vector<1x64xf32>
    %cst_47 = arith.constant dense<0.000000e+00> : vector<8xf32>
    %130 = vector.multi_reduction <add>, %127, %cst_47 [1] : vector<8x64xf32> to vector<8xf32>
    %131 = vector.shape_cast %130 : vector<8xf32> to vector<8x1xf32>
    %cst_48 = arith.constant 6.400000e+01 : f32
    %132 = vector.broadcast %cst_48 : f32 to vector<8x1xf32>
    %133 = arith.divf %131, %132 : vector<8x1xf32>
    %134 = vector.broadcast %133 : vector<8x1xf32> to vector<8x64xf32>
    %135 = arith.subf %127, %134 : vector<8x64xf32>
    %136 = arith.mulf %135, %135 : vector<8x64xf32>
    %cst_49 = arith.constant dense<0.000000e+00> : vector<8xf32>
    %137 = vector.multi_reduction <add>, %136, %cst_49 [1] : vector<8x64xf32> to vector<8xf32>
    %138 = vector.shape_cast %137 : vector<8xf32> to vector<8x1xf32>
    %cst_50 = arith.constant 6.400000e+01 : f32
    %139 = vector.broadcast %cst_50 : f32 to vector<8x1xf32>
    %140 = arith.divf %138, %139 : vector<8x1xf32>
    %141 = vector.broadcast %133 : vector<8x1xf32> to vector<8x64xf32>
    %142 = arith.subf %127, %141 : vector<8x64xf32>
    %cst_51 = arith.constant 9.99999974E-6 : f32
    %143 = vector.broadcast %cst_51 : f32 to vector<8x1xf32>
    %144 = arith.addf %140, %143 : vector<8x1xf32>
    %145 = math.rsqrt %144 : vector<8x1xf32>
    %146 = vector.broadcast %145 : vector<8x1xf32> to vector<8x64xf32>
    %147 = arith.mulf %142, %146 : vector<8x64xf32>
    %148 = vector.broadcast %128 : vector<1x64xf32> to vector<8x64xf32>
    %149 = arith.mulf %147, %148 : vector<8x64xf32>
    %150 = vector.broadcast %129 : vector<1x64xf32> to vector<8x64xf32>
    %151 = arith.addf %149, %150 : vector<8x64xf32>
    %152 = arith.truncf %151 : vector<8x64xf32> to vector<8x64xbf16>
    %c0_52 = arith.constant 0 : index
    %c0_53 = arith.constant 0 : index
    %153 = vector.load %arg7[%c0_52, %c0_53] : memref<64x64xbf16, #tpu.memory_space<vmem>>, vector<64x64xbf16>
    %cst_54 = arith.constant dense<0.000000e+00> : vector<8x64xf32>
    %154 = tpu.matmul %152, %153, %cst_54 {dimension_numbers = #tpu.dot_dimension_numbers<[1], [0], [0], [1], [0, 0, 1, 1], [], []>} : vector<8x64xbf16>, vector<64x64xbf16>, vector<8x64xf32> -> vector<8x64xf32>
    %c12 = arith.constant 12 : index
    %c0_55 = arith.constant 0 : index
    %155 = vector.load %arg8[%c12, %c0_55] : memref<16x256xf32, #tpu.memory_space<vmem>>, vector<1x64xf32>
    %156 = vector.broadcast %155 : vector<1x64xf32> to vector<8x64xf32>
    %157 = arith.addf %154, %156 : vector<8x64xf32>
    %158 = tpu.concatenate %127, %157 in 1 : vector<8x64xf32>, vector<8x64xf32> -> vector<8x128xf32>
    %c0_56 = arith.constant 0 : index
    %c0_57 = arith.constant 0 : index
    %159 = vector.load %arg9[%c0_56, %c0_57] : memref<8x128xf32, #tpu.memory_space<vmem>>, vector<8x128xf32>
    tpu.vector_store %arg9[%c0_56, %c0_57], %158 {strides = array<i32>} : memref<8x128xf32, #tpu.memory_space<vmem>>, vector<8x128xf32>,
    return
  }
  func.func @transform_0(%arg0: i32) -> (i32, i32) {
    %c0_i32 = arith.constant 0 : i32
    %c0_i32_0 = arith.constant 0 : i32
    return %arg0, %c0_i32 : i32, i32
  }
  func.func @transform_1(%arg0: i32) -> (i32, i32) {
    %c0_i32 = arith.constant 0 : i32
    %c0_i32_0 = arith.constant 0 : i32
    return %arg0, %c0_i32 : i32, i32
  }
  func.func @transform_2(%arg0: i32) -> (i32, i32) {
    %c0_i32 = arith.constant 0 : i32
    %c0_i32_0 = arith.constant 0 : i32
    %c0_i32_1 = arith.constant 0 : i32
    return %c0_i32, %c0_i32_0 : i32, i32
  }
  func.func @transform_3(%arg0: i32) -> (i32, i32) {
    %c0_i32 = arith.constant 0 : i32
    %c0_i32_0 = arith.constant 0 : i32
    %c0_i32_1 = arith.constant 0 : i32
    return %c0_i32, %c0_i32_0 : i32, i32
  }
  func.func @transform_4(%arg0: i32) -> (i32, i32) {
    %c0_i32 = arith.constant 0 : i32
    %c0_i32_0 = arith.constant 0 : i32
    %c0_i32_1 = arith.constant 0 : i32
    return %c0_i32, %c0_i32_0 : i32, i32
  }
  func.func @transform_5(%arg0: i32) -> (i32, i32) {
    %c0_i32 = arith.constant 0 : i32
    %c0_i32_0 = arith.constant 0 : i32
    %c0_i32_1 = arith.constant 0 : i32
    return %c0_i32, %c0_i32_0 : i32, i32
  }
  func.func @transform_6(%arg0: i32) -> (i32, i32) {
    %c0_i32 = arith.constant 0 : i32
    %c0_i32_0 = arith.constant 0 : i32
    %c0_i32_1 = arith.constant 0 : i32
    return %c0_i32, %c0_i32_0 : i32, i32
  }
  func.func @transform_7(%arg0: i32) -> (i32, i32) {
    %c0_i32 = arith.constant 0 : i32
    %c0_i32_0 = arith.constant 0 : i32
    %c0_i32_1 = arith.constant 0 : i32
    return %c0_i32, %c0_i32_0 : i32, i32
  }
  func.func @transform_8(%arg0: i32) -> (i32, i32) {
    %c0_i32 = arith.constant 0 : i32
    %c0_i32_0 = arith.constant 0 : i32
    return %arg0, %c0_i32 : i32, i32
  }
}

</mosaic_0001>

<llo_original>
// kernel: tpu_custom_call.1
$region0: #{tpu_custom_call.1}
  #allocation0 [shape = 'u32[]', space=smem, size = 0x4, offset = 0x4, fixed_abs, tag = 'smem constant byte address 0x4 - core index']
  #allocation1 [shape = 'u32[144,128]{1,0:T(1,128)}', space=vmem, size = 0x12000, scoped, tag = 'internal scratch']
  %s0 = inlined_call_operand.hbm [shape: f32[16,32], index: 0, kind: input, shape index: {}]
  %s1 = inlined_call_operand.hbm [shape: f32[16,64], index: 1, kind: input, shape index: {}]
  %s2 = inlined_call_operand.hbm [shape: bf16[32,64], index: 2, kind: input, shape index: {}]
  %s3 = inlined_call_operand.hbm [shape: bf16[64,64], index: 3, kind: input, shape index: {}]
  %s4 = inlined_call_operand.hbm [shape: bf16[64,192], index: 4, kind: input, shape index: {}]
  %s5 = inlined_call_operand.hbm [shape: bf16[64,192], index: 5, kind: input, shape index: {}]
  %s6 = inlined_call_operand.hbm [shape: bf16[64,64], index: 6, kind: input, shape index: {}]
  %s7 = inlined_call_operand.hbm [shape: f32[16,256], index: 7, kind: input, shape index: {}]
  %s8 = inlined_call_operand.hbm [shape: f32[16,128], index: 8, kind: output, shape index: {}]
  %s9 = sld [smem:[#allocation0]]
  $region97: #{tpu_custom_call.1} parent=0
    _
  %s11 = ssub.s32 1, %s9
  %s12 = scalar_select 0, %s11, %s9
  $region1: #{tpu_custom_call.1} parent=0
    #allocation2 [shape = 'u8[8192]{0}', space=vmem, size = 0x2000, scoped, tag = 'input window, operand 0']
    #allocation3 [shape = 's32[2]{0}', space=sflag, size = 0x8, scoped, tag = 'scoped memory for tpu_custom_call.1']
    #allocation4 [shape = 's32[2]{0}', space=sflag, size = 0x8, scoped, tag = 'scoped memory for tpu_custom_call.1']
    #allocation5 [shape = 'u8[8192]{0}', space=vmem, size = 0x2000, scoped, tag = 'input window, operand 1']
    #allocation6 [shape = 's32[2]{0}', space=sflag, size = 0x8, scoped, tag = 'scoped memory for tpu_custom_call.1']
    #allocation7 [shape = 'u8[8192]{0}', space=vmem, size = 0x2000, scoped, tag = 'input window, operand 2, single buffered']
    #allocation8 [shape = 'u8[16384]{0}', space=vmem, size = 0x4000, scoped, tag = 'input window, operand 3, single buffered']
    #allocation9 [shape = 's32[1]{0}', space=sflag, size = 0x4, scoped, tag = 'scoped memory for tpu_custom_call.1']
    #allocation10 [shape = 'u8[32768]{0}', space=vmem, size = 0x8000, scoped, tag = 'input window, operand 4, single buffered']
    #allocation11 [shape = 'u8[32768]{0}', space=vmem, size = 0x8000, scoped, tag = 'input window, operand 5, single buffered']
    #allocation12 [shape = 's32[1]{0}', space=sflag, size = 0x4, scoped, tag = 'scoped memory for tpu_custom_call.1']
    #allocation13 [shape = 'u8[16384]{0}', space=vmem, size = 0x4000, scoped, tag = 'input window, operand 6, single buffered']
    #allocation14 [shape = 'u8[16384]{0}', space=vmem, size = 0x4000, scoped, tag = 'input window, operand 7, single buffered']
    #allocation15 [shape = 's32[1]{0}', space=sflag, size = 0x4, scoped, tag = 'scoped memory for tpu_custom_call.1']
    #allocation16 [shape = 'u8[8192]{0}', space=vmem, size = 0x2000, scoped, tag = 'output window, operand 0']
    %13 = vsyncpa [#allocation3], 0
    %s14 = scalar_lea.sflag [#allocation3], 1
    %15 = vsyncpa %s14, 0
    %16 = vsyncpa [#allocation6], 0
    %s17 = scalar_lea.sflag [#allocation6], 1
    %18 = vsyncpa %s17, 0
    %19 = vsyncpa [#allocation9], 0
    %20 = vsyncpa [#allocation12], 0
    %21 = vsyncpa [#allocation15], 0
    %22 = vsyncpa [#allocation4], 0
    %s23 = scalar_lea.sflag [#allocation4], 1
    %24 = vsyncpa %s23, 0
    loop: start=0, step=1, limit=4
    $region2: #{tpu_custom_call.1} parent=1 // loop_pre_header
      _
    $region3: #{tpu_custom_call.1} parent=1 // loop_header
      %s26 = sphi 0, %s30
      %p27 = scmp.ge.s32.totalorder %s26, 4
      %s36 = sphi 0, %s38
      %s39 = sphi 0, %s36
      %s40 = sphi 0, %s39
      %s56 = sphi 0, %s40
      %s62 = sphi 0, %s64
      %s65 = sphi 0, %s62
      %s66 = sphi 0, %s65
      %s82 = sphi 0, %s66
      %s86 = sphi 0, %s86
      %s88 = sphi 0, %s86
      %s89 = sphi 0, %s88
      %s103 = sphi 0, %s89
      %s107 = sphi 0, %s107
      %s109 = sphi 0, %s107
      %s110 = sphi 0, %s109
      %s124 = sphi 0, %s110
      %s128 = sphi 0, %s128
      %s130 = sphi 0, %s128
      %s131 = sphi 0, %s130
      %s145 = sphi 0, %s131
      %s149 = sphi 0, %s149
      %s151 = sphi 0, %s149
      %s152 = sphi 0, %s151
      %s166 = sphi 0, %s152
      %s170 = sphi 0, %s170
      %s172 = sphi 0, %s170
      %s173 = sphi 0, %s172
      %s187 = sphi 0, %s173
      %s191 = sphi 0, %s191
      %s193 = sphi 0, %s191
      %s194 = sphi 0, %s193
      %s208 = sphi 0, %s194
      %s214 = sphi 0, %s216
      %s217 = sphi 0, %s214
      %s218 = sphi 0, %s217
      %s234 = sphi 0, %s218
    $region4: #{tpu_custom_call.1} parent=1 // loop_header_branch
      %29 = sbr.rel (%p27) target = $region8
    $region5: #{tpu_custom_call.1} parent=1 // loop_body
      %s31 = ssub.s32 %s26, 1
      %s32 = ssub.s32 %s26, 2
      %s33 = sadd.s32 %s26, 1
      %s34 = ssub.s32 %s26, %s33
      %p35 = scmp.eq.s32.totalorder %s34, 0
      %s37 = sadd.s32 %s36, 1
      %s38 = scalar_select %p35, %s36, %s37
      %p41 = pneg %p35
      %p42 = scmp.eq.s32.totalorder %s26, 1
      %p43 = por %p41, %p42
      %p44 = scmp.ne.s32.totalorder %s36, %s39
      %p45 = scmp.eq.s32.totalorder %s26, 0
      %p46 = por %p44, %p45
      %p47 = scmp.ne.s32.totalorder %s36, %s39
      %p48 = scmp.eq.s32.totalorder %s31, 1
      %p49 = por %p47, %p48
      %p50 = scmp.ne.s32.totalorder %s39, %s40
      %p51 = scmp.eq.s32.totalorder %s31, 0
      %p52 = por %p50, %p51
      %p53 = scmp.ne.s32.totalorder %s39, %s40
      %p54 = scmp.eq.s32.totalorder %s32, 1
      %p55 = por %p53, %p54
      %p57 = scmp.ne.s32.totalorder %s40, %s56
      %p58 = scmp.eq.s32.totalorder %s32, 0
      %p59 = por %p57, %p58
      %s60 = ssub.s32 %s26, %s33
      %p61 = scmp.eq.s32.totalorder %s60, 0
      %s63 = sadd.s32 %s62, 1
      %s64 = scalar_select %p61, %s62, %s63
      %p67 = pneg %p61
      %p68 = scmp.eq.s32.totalorder %s26, 1
      %p69 = por %p67, %p68
      %p70 = scmp.ne.s32.totalorder %s62, %s65
      %p71 = scmp.eq.s32.totalorder %s26, 0
      %p72 = por %p70, %p71
      %p73 = scmp.ne.s32.totalorder %s62, %s65
      %p74 = scmp.eq.s32.totalorder %s31, 1
      %p75 = por %p73, %p74
      %p76 = scmp.ne.s32.totalorder %s65, %s66
      %p77 = scmp.eq.s32.totalorder %s31, 0
      %p78 = por %p76, %p77
      %p79 = scmp.ne.s32.totalorder %s65, %s66
      %p80 = scmp.eq.s32.totalorder %s32, 1
      %p81 = por %p79, %p80
      %p83 = scmp.ne.s32.totalorder %s66, %s82
      %p84 = scmp.eq.s32.totalorder %s32, 0
      %p85 = por %p83, %p84
      %s87 = sadd.s32 %s86, 1
      %p90 = scmp.eq.s32.totalorder %s26, 1
      %p91 = scmp.ne.s32.totalorder %s86, %s88
      %p92 = scmp.eq.s32.totalorder %s26, 0
      %p93 = por %p91, %p92
      %p94 = scmp.ne.s32.totalorder %s86, %s88
      %p95 = scmp.eq.s32.totalorder %s31, 1
      %p96 = por %p94, %p95
      %p97 = scmp.ne.s32.totalorder %s88, %s89
      %p98 = scmp.eq.s32.totalorder %s31, 0
      %p99 = por %p97, %p98
      %p100 = scmp.ne.s32.totalorder %s88, %s89
      %p101 = scmp.eq.s32.totalorder %s32, 1
      %p102 = por %p100, %p101
      %p104 = scmp.ne.s32.totalorder %s89, %s103
      %p105 = scmp.eq.s32.totalorder %s32, 0
      %p106 = por %p104, %p105
      %s108 = sadd.s32 %s107, 1
      %p111 = scmp.eq.s32.totalorder %s26, 1
      %p112 = scmp.ne.s32.totalorder %s107, %s109
      %p113 = scmp.eq.s32.totalorder %s26, 0
      %p114 = por %p112, %p113
      %p115 = scmp.ne.s32.totalorder %s107, %s109
      %p116 = scmp.eq.s32.totalorder %s31, 1
      %p117 = por %p115, %p116
      %p118 = scmp.ne.s32.totalorder %s109, %s110
      %p119 = scmp.eq.s32.totalorder %s31, 0
      %p120 = por %p118, %p119
      %p121 = scmp.ne.s32.totalorder %s109, %s110
      %p122 = scmp.eq.s32.totalorder %s32, 1
      %p123 = por %p121, %p122
      %p125 = scmp.ne.s32.totalorder %s110, %s124
      %p126 = scmp.eq.s32.totalorder %s32, 0
      %p127 = por %p125, %p126
      %s129 = sadd.s32 %s128, 1
      %p132 = scmp.eq.s32.totalorder %s26, 1
      %p133 = scmp.ne.s32.totalorder %s128, %s130
      %p134 = scmp.eq.s32.totalorder %s26, 0
      %p135 = por %p133, %p134
      %p136 = scmp.ne.s32.totalorder %s128, %s130
      %p137 = scmp.eq.s32.totalorder %s31, 1
      %p138 = por %p136, %p137
      %p139 = scmp.ne.s32.totalorder %s130, %s131
      %p140 = scmp.eq.s32.totalorder %s31, 0
      %p141 = por %p139, %p140
      %p142 = scmp.ne.s32.totalorder %s130, %s131
      %p143 = scmp.eq.s32.totalorder %s32, 1
      %p144 = por %p142, %p143
      %p146 = scmp.ne.s32.totalorder %s131, %s145
      %p147 = scmp.eq.s32.totalorder %s32, 0
      %p148 = por %p146, %p147
      %s150 = sadd.s32 %s149, 1
      %p153 = scmp.eq.s32.totalorder %s26, 1
      %p154 = scmp.ne.s32.totalorder %s149, %s151
      %p155 = scmp.eq.s32.totalorder %s26, 0
      %p156 = por %p154, %p155
      %p157 = scmp.ne.s32.totalorder %s149, %s151
      %p158 = scmp.eq.s32.totalorder %s31, 1
      %p159 = por %p157, %p158
      %p160 = scmp.ne.s32.totalorder %s151, %s152
      %p161 = scmp.eq.s32.totalorder %s31, 0
      %p162 = por %p160, %p161
      %p163 = scmp.ne.s32.totalorder %s151, %s152
      %p164 = scmp.eq.s32.totalorder %s32, 1
      %p165 = por %p163, %p164
      %p167 = scmp.ne.s32.totalorder %s152, %s166
      %p168 = scmp.eq.s32.totalorder %s32, 0
      %p169 = por %p167, %p168
      %s171 = sadd.s32 %s170, 1
      %p174 = scmp.eq.s32.totalorder %s26, 1
      %p175 = scmp.ne.s32.totalorder %s170, %s172
      %p176 = scmp.eq.s32.totalorder %s26, 0
      %p177 = por %p175, %p176
      %p178 = scmp.ne.s32.totalorder %s170, %s172
      %p179 = scmp.eq.s32.totalorder %s31, 1
      %p180 = por %p178, %p179
      %p181 = scmp.ne.s32.totalorder %s172, %s173
      %p182 = scmp.eq.s32.totalorder %s31, 0
      %p183 = por %p181, %p182
      %p184 = scmp.ne.s32.totalorder %s172, %s173
      %p185 = scmp.eq.s32.totalorder %s32, 1
      %p186 = por %p184, %p185
      %p188 = scmp.ne.s32.totalorder %s173, %s187
      %p189 = scmp.eq.s32.totalorder %s32, 0
      %p190 = por %p188, %p189
      %s192 = sadd.s32 %s191, 1
      %p195 = scmp.eq.s32.totalorder %s26, 1
      %p196 = scmp.ne.s32.totalorder %s191, %s193
      %p197 = scmp.eq.s32.totalorder %s26, 0
      %p198 = por %p196, %p197
      %p199 = scmp.ne.s32.totalorder %s191, %s193
      %p200 = scmp.eq.s32.totalorder %s31, 1
      %p201 = por %p199, %p200
      %p202 = scmp.ne.s32.totalorder %s193, %s194
      %p203 = scmp.eq.s32.totalorder %s31, 0
      %p204 = por %p202, %p203
      %p205 = scmp.ne.s32.totalorder %s193, %s194
      %p206 = scmp.eq.s32.totalorder %s32, 1
      %p207 = por %p205, %p206
      %p209 = scmp.ne.s32.totalorder %s194, %s208
      %p210 = scmp.eq.s32.totalorder %s32, 0
      %p211 = por %p209, %p210
      %s212 = ssub.s32 %s26, %s33
      %p213 = scmp.eq.s32.totalorder %s212, 0
      %s215 = sadd.s32 %s214, 1
      %s216 = scalar_select %p213, %s214, %s215
      %p219 = pneg %p213
      %p220 = scmp.eq.s32.totalorder %s26, 1
      %p221 = por %p219, %p220
      %p222 = scmp.ne.s32.totalorder %s214, %s217
      %p223 = scmp.eq.s32.totalorder %s26, 0
      %p224 = por %p222, %p223
      %p225 = scmp.ne.s32.totalorder %s214, %s217
      %p226 = scmp.eq.s32.totalorder %s31, 1
      %p227 = por %p225, %p226
      %p228 = scmp.ne.s32.totalorder %s217, %s218
      %p229 = scmp.eq.s32.totalorder %s31, 0
      %p230 = por %p228, %p229
      %p231 = scmp.ne.s32.totalorder %s217, %s218
      %p232 = scmp.eq.s32.totalorder %s32, 1
      %p233 = por %p231, %p232
      %p235 = scmp.ne.s32.totalorder %s218, %s234
      %p236 = scmp.eq.s32.totalorder %s32, 0
      %p237 = por %p235, %p236
      %p238 = scmp.le.s32.totalorder 1, %s26
      %p239 = scmp.lt.s32.totalorder %s26, 3
      %p240 = pnand %p238, %p239
      %p241 = pneg %p240
      // Predicated region
      $region9: #{tpu_custom_call.1} parent=5 // pred_check
        _
      $region10: #{tpu_custom_call.1} parent=5 // pred_check_branch
        %243 = sbr.rel (%p240) target = $region12
      $region11: #{tpu_custom_call.1} parent=5 // pred_region
        %s244 = ssub.s32 %s26, 1
        // Predicated region
        $region13: #{tpu_custom_call.1} parent=11 // pred_check
          %p245 = pneg %p99
        $region14: #{tpu_custom_call.1} parent=11 // pred_check_branch
          %247 = sbr.rel (%p245) target = $region16
        $region15: #{tpu_custom_call.1} parent=11 // pred_region
          %s249 = ssub.s32 256, 256
          %250 = vsyncadd [#allocation6], %s249
          %s251 = sshll.u32 [#allocation7], 4
          %s252 = int_to_ptr.vmem [resolvable:$true] %s251
          %257 = dma.hbm_to_vmem [thread:$0]  %s2, 256, %s252, [#allocation6], 64, 64, 4
        $region16: #{tpu_custom_call.1} parent=11 // pred_fallthru
          _
        // Predicated region
        $region17: #{tpu_custom_call.1} parent=11 // pred_check
          %p258 = pneg %p120
        $region18: #{tpu_custom_call.1} parent=11 // pred_check_branch
          %260 = sbr.rel (%p258) target = $region20
        $region19: #{tpu_custom_call.1} parent=11 // pred_region
          %s262 = ssub.s32 512, 512
          %263 = vsyncadd [#allocation9], %s262
          %s264 = sshll.u32 [#allocation8], 4
          %s265 = int_to_ptr.vmem [resolvable:$true] %s264
          %270 = dma.hbm_to_vmem [thread:$0]  %s3, 512, %s265, [#allocation9], 64, 64, 4
        $region20: #{tpu_custom_call.1} parent=11 // pred_fallthru
          _
        // Predicated region
        $region21: #{tpu_custom_call.1} parent=11 // pred_check
          %p271 = pneg %p141
        $region22: #{tpu_custom_call.1} parent=11 // pred_check_branch
          %273 = sbr.rel (%p271) target = $region24
        $region23: #{tpu_custom_call.1} parent=11 // pred_region
          %s275 = ssub.s32 1024, 1024
          %276 = vsyncadd [#allocation9], %s275
          %s277 = sshll.u32 [#allocation10], 4
          %s278 = int_to_ptr.vmem [resolvable:$true] %s277
          %283 = dma.hbm_to_vmem [thread:$0]  %s4, 1024, %s278, [#allocation9], 128, 128, 8
        $region24: #{tpu_custom_call.1} parent=11 // pred_fallthru
          _
        // Predicated region
        $region25: #{tpu_custom_call.1} parent=11 // pred_check
          %p284 = pneg %p162
        $region26: #{tpu_custom_call.1} parent=11 // pred_check_branch
          %286 = sbr.rel (%p284) target = $region28
        $region27: #{tpu_custom_call.1} parent=11 // pred_region
          %s288 = ssub.s32 1024, 1024
          %289 = vsyncadd [#allocation12], %s288
          %s290 = sshll.u32 [#allocation11], 4
          %s291 = int_to_ptr.vmem [resolvable:$true] %s290
          %296 = dma.hbm_to_vmem [thread:$0]  %s5, 1024, %s291, [#allocation12], 128, 128, 8
        $region28: #{tpu_custom_call.1} parent=11 // pred_fallthru
          _
        // Predicated region
        $region29: #{tpu_custom_call.1} parent=11 // pred_check
          %p297 = pneg %p183
        $region30: #{tpu_custom_call.1} parent=11 // pred_check_branch
          %299 = sbr.rel (%p297) target = $region32
        $region31: #{tpu_custom_call.1} parent=11 // pred_region
          %s301 = ssub.s32 512, 512
          %302 = vsyncadd [#allocation12], %s301
          %s303 = sshll.u32 [#allocation13], 4
          %s304 = int_to_ptr.vmem [resolvable:$true] %s303
          %309 = dma.hbm_to_vmem [thread:$0]  %s6, 512, %s304, [#allocation12], 64, 64, 4
        $region32: #{tpu_custom_call.1} parent=11 // pred_fallthru
          _
        // Predicated region
        $region33: #{tpu_custom_call.1} parent=11 // pred_check
          %p310 = pneg %p204
        $region34: #{tpu_custom_call.1} parent=11 // pred_check_branch
          %312 = sbr.rel (%p310) target = $region36
        $region35: #{tpu_custom_call.1} parent=11 // pred_region
          %s314 = ssub.s32 512, 512
          %315 = vsyncadd [#allocation15], %s314
          %s316 = sshll.u32 [#allocation14], 4
          %s317 = int_to_ptr.vmem [resolvable:$true] %s316
          %322 = dma.hbm_to_vmem [thread:$0]  %s7, 512, %s317, [#allocation15], 256, 256, 16
        $region36: #{tpu_custom_call.1} parent=11 // pred_fallthru
          _
      $region12: #{tpu_custom_call.1} parent=5 // pred_fallthru
        _
      %p323 = scmp.lt.s32.totalorder %s26, 2
      // Predicated region
      $region37: #{tpu_custom_call.1} parent=5 // pred_check
        %p324 = pneg %p323
      $region38: #{tpu_custom_call.1} parent=5 // pred_check_branch
        %326 = sbr.rel (%p324) target = $region40
      $region39: #{tpu_custom_call.1} parent=5 // pred_region
        // Predicated region
        $region41: #{tpu_custom_call.1} parent=39 // pred_check
          %p327 = pneg %p46
        $region42: #{tpu_custom_call.1} parent=39 // pred_check_branch
          %329 = sbr.rel (%p327) target = $region44
        $region43: #{tpu_custom_call.1} parent=39 // pred_region
          %s330 = sand.u32 %s36, 1
          %s331 = scalar_lea.sflag [#allocation3], %s330
          %s332 = sand.u32 %s36, 1
          %s333 = smul.addr %s332, 8
          %s334 = scalar_lea.vmem [#allocation2], %s333
          %s336 = ssub.s32 128, 128
          %337 = vsyncadd %s331, %s336
          %s338 = smul.addr %s26, 128
          %s339 = scalar_lea.hbm %s0, %s338
          %s341 = sshll.u32 %s334, 4
          %s342 = int_to_ptr.vmem [resolvable:$true] %s341
          %344 = dma.hbm_to_vmem [thread:$0]  %s339, 128, %s342, %s331
        $region44: #{tpu_custom_call.1} parent=39 // pred_fallthru
          _
        // Predicated region
        $region45: #{tpu_custom_call.1} parent=39 // pred_check
          %p345 = pneg %p72
        $region46: #{tpu_custom_call.1} parent=39 // pred_check_branch
          %347 = sbr.rel (%p345) target = $region48
        $region47: #{tpu_custom_call.1} parent=39 // pred_region
          %s348 = sand.u32 %s26, 1
          %s349 = scalar_lea.sflag [#allocation6], %s348
          %s350 = sand.u32 %s62, 1
          %s351 = smul.addr %s350, 8
          %s352 = scalar_lea.vmem [#allocation5], %s351
          %s354 = ssub.s32 128, 128
          %355 = vsyncadd %s349, %s354
          %s356 = smul.addr %s26, 128
          %s357 = scalar_lea.hbm %s1, %s356
          %s359 = sshll.u32 %s352, 4
          %s360 = int_to_ptr.vmem [resolvable:$true] %s359
          %362 = dma.hbm_to_vmem [thread:$0]  %s357, 128, %s360, %s349
        $region48: #{tpu_custom_call.1} parent=39 // pred_fallthru
          _
      $region40: #{tpu_custom_call.1} parent=5 // pred_fallthru
        _
      %p363 = scmp.le.s32.totalorder 1, %s26
      %p364 = scmp.lt.s32.totalorder %s26, 3
      %p365 = pnand %p363, %p364
      %p366 = pneg %p365
      // Predicated region
      $region49: #{tpu_custom_call.1} parent=5 // pred_check
        _
      $region50: #{tpu_custom_call.1} parent=5 // pred_check_branch
        %368 = sbr.rel (%p365) target = $region52
      $region51: #{tpu_custom_call.1} parent=5 // pred_region
        %s369 = ssub.s32 %s26, 1
        %s370 = sand.u32 %s39, 1
        %s371 = scalar_lea.sflag [#allocation3], %s370
        %s372 = sand.u32 %s39, 1
        %s373 = smul.addr %s372, 8
        %s374 = scalar_lea.vmem [#allocation2], %s373
        // Predicated region
        $region53: #{tpu_custom_call.1} parent=51 // pred_check
          %p375 = pneg %p52
        $region54: #{tpu_custom_call.1} parent=51 // pred_check_branch
          %377 = sbr.rel (%p375) target = $region56
        $region55: #{tpu_custom_call.1} parent=51 // pred_region
          %378 = dma.done %s371, 128
        $region56: #{tpu_custom_call.1} parent=51 // pred_fallthru
          _
        %s379 = sand.u32 %s31, 1
        %s380 = scalar_lea.sflag [#allocation6], %s379
        %s381 = sand.u32 %s65, 1
        %s382 = smul.addr %s381, 8
        %s383 = scalar_lea.vmem [#allocation5], %s382
        // Predicated region
        $region57: #{tpu_custom_call.1} parent=51 // pred_check
          %p384 = pneg %p78
        $region58: #{tpu_custom_call.1} parent=51 // pred_check_branch
          %386 = sbr.rel (%p384) target = $region60
        $region59: #{tpu_custom_call.1} parent=51 // pred_region
          %387 = dma.done %s380, 128
        $region60: #{tpu_custom_call.1} parent=51 // pred_fallthru
          _
        // Predicated region
        $region61: #{tpu_custom_call.1} parent=51 // pred_check
          %p388 = pneg %p99
        $region62: #{tpu_custom_call.1} parent=51 // pred_check_branch
          %390 = sbr.rel (%p388) target = $region64
        $region63: #{tpu_custom_call.1} parent=51 // pred_region
          %391 = dma.done [#allocation6], 256
        $region64: #{tpu_custom_call.1} parent=51 // pred_fallthru
          _
        // Predicated region
        $region65: #{tpu_custom_call.1} parent=51 // pred_check
          %p392 = pneg %p120
        $region66: #{tpu_custom_call.1} parent=51 // pred_check_branch
          %394 = sbr.rel (%p392) target = $region68
        $region67: #{tpu_custom_call.1} parent=51 // pred_region
          %395 = dma.done [#allocation9], 512
        $region68: #{tpu_custom_call.1} parent=51 // pred_fallthru
          _
        // Predicated region
        $region69: #{tpu_custom_call.1} parent=51 // pred_check
          %p396 = pneg %p141
        $region70: #{tpu_custom_call.1} parent=51 // pred_check_branch
          %398 = sbr.rel (%p396) target = $region72
        $region71: #{tpu_custom_call.1} parent=51 // pred_region
          %399 = dma.done [#allocation9], 1024
        $region72: #{tpu_custom_call.1} parent=51 // pred_fallthru
          _
        // Predicated region
        $region73: #{tpu_custom_call.1} parent=51 // pred_check
          %p400 = pneg %p162
        $region74: #{tpu_custom_call.1} parent=51 // pred_check_branch
          %402 = sbr.rel (%p400) target = $region76
        $region75: #{tpu_custom_call.1} parent=51 // pred_region
          %403 = dma.done [#allocation12], 1024
        $region76: #{tpu_custom_call.1} parent=51 // pred_fallthru
          _
        // Predicated region
        $region77: #{tpu_custom_call.1} parent=51 // pred_check
          %p404 = pneg %p183
        $region78: #{tpu_custom_call.1} parent=51 // pred_check_branch
          %406 = sbr.rel (%p404) target = $region80
        $region79: #{tpu_custom_call.1} parent=51 // pred_region
          %407 = dma.done [#allocation12], 512
        $region80: #{tpu_custom_call.1} parent=51 // pred_fallthru
          _
        // Predicated region
        $region81: #{tpu_custom_call.1} parent=51 // pred_check
          %p408 = pneg %p204
        $region82: #{tpu_custom_call.1} parent=51 // pred_check_branch
          %410 = sbr.rel (%p408) target = $region84
        $region83: #{tpu_custom_call.1} parent=51 // pred_region
          %411 = dma.done [#allocation15], 512
        $region84: #{tpu_custom_call.1} parent=51 // pred_fallthru
          _
        %s412 = sand.u32 %s39, 1
        %s413 = scalar_lea.sflag [#allocation3], %s412
        %s414 = sand.u32 %s39, 1
        %s415 = smul.addr %s414, 8
        %s416 = scalar_lea.vmem [#allocation2], %s415
        %p417 = pneg %p52
        %p418 = pneg %p49
        %s419 = sand.u32 %s31, 1
        %s420 = scalar_lea.sflag [#allocation6], %s419
        %s421 = sand.u32 %s65, 1
        %s422 = smul.addr %s421, 8
        %s423 = scalar_lea.vmem [#allocation5], %s422
        %p424 = pneg %p78
        %p425 = pneg %p75
        %p426 = pneg %p99
        %p427 = pneg %p96
        %p428 = pneg %p120
        %p429 = pneg %p117
        %p430 = pneg %p141
        %p431 = pneg %p138
        %p432 = pneg %p162
        %p433 = pneg %p159
        %p434 = pneg %p183
        %p435 = pneg %p180
        %p436 = pneg %p204
        %p437 = pneg %p201
        %p438 = pneg %p230
        %p439 = pneg %p227
        %s440 = sand.u32 %s217, 1
        %s441 = scalar_lea.sflag [#allocation4], %s440
        %s442 = sand.u32 %s217, 1
        %s443 = smul.addr %s442, 8
        %s444 = scalar_lea.vmem [#allocation16], %s443
        %v446 = vld [vmem:[%s374] sm:$0xff]
        %v447 = vld [vmem:[#allocation14] ss:$0 sm:$0xff]
        %v448 = vld [vmem:[#allocation14 + $0x1] ss:$0 sm:$0xff]
        %vm449 = vcmask 261120
        %v450 = vsel %vm449, %v446, 0.0
        %451 = vadd.xlane.f32.xlu0 %v450
        %v452 = vpop.xlane.xlu0 %451
        %v453 = vrcp.pop 32.0
        %v454 = vmul.f32 %v452, %v453
        %v455 = vsub.f32 %v446, %v454
        %v456 = vmul.f32 %v455, %v455
        %v457 = vsel %vm449, %v456, 0.0
        %458 = vadd.xlane.f32.xlu0 %v457
        %v459 = vpop.xlane.xlu0 %458
        %v460 = vmul.f32 %v459, %v453
        %v461 = vadd.f32 %v460, 1e-05
        %v462 = vrsqrt.pop %v461
        %v463 = vmul.f32 %v455, %v462
        %v464 = vmul.f32 %v463, %v447
        %v465 = vadd.f32 %v464, %v448
        %v466 = vpack.c.bf16 %v465, %v465
        %v467 = vld [vmem:[#allocation7] sm:$0xf]
        %v468 = vld [vmem:[#allocation7 + $0x4] sm:$0xf]
        %v469 = vld [vmem:[#allocation7 + $0x8] sm:$0xf]
        %v470 = vld [vmem:[#allocation7 + $0xc] sm:$0xf]
        %v471 = vld [vmem:[#allocation14 + $0x2] ss:$0 sm:$0xff]
        %v476 = vunpack.c.l.b16 %v467
        %v477 = vunpack.c.l.b16 %v468
        %v478 = vunpack.c.l.b16 %v469
        %v479 = vunpack.c.l.b16 %v470
        %v480 = vpack.c.b16 %v477, %v476
        %v481 = vpack.c.b16 %v479, %v478
        %v485 = vsel %vm449, %v466, 0
        %487 = vmatprep.subr.bf16.mxu0 0
        %488 = vmatpush1.bf16.msra.mxu0 %v480
        %489 = vmatprep.subr.bf16.mxu0 0
        %490 = vmatpush1.bf16.msra.mxu0 %v481
        %491 = vmatprep.subr.bf16.mxu0 0
        %492 = vmatpush1.bf16.msra.mxu0 0
        %493 = vmatprep.subr.bf16.mxu0 0
        %494 = vmatpush1.bf16.msra.mxu0 0
        %495 = vmatprep.subr.bf16.mxu0 0
        %496 = vmatpush1.bf16.msra.mxu0 0
        %497 = vmatprep.subr.bf16.mxu0 0
        %498 = vmatpush1.bf16.msra.mxu0 0
        %499 = vmatprep.subr.bf16.mxu0 0
        %500 = vmatpush1.bf16.msra.mxu0 0
        %501 = vmatprep.subr.bf16.mxu0 0
        %502 = vmatpush1.bf16.msra.mxu0 0
        %503 = vmatprep.subr.bf16.mxu0 0
        %504 = vmatpush1.bf16.msra.mxu0 0
        %505 = vmatprep.subr.bf16.mxu0 0
        %506 = vmatpush1.bf16.msra.mxu0 0
        %507 = vmatprep.subr.bf16.mxu0 0
        %508 = vmatpush1.bf16.msra.mxu0 0
        %509 = vmatprep.subr.bf16.mxu0 0
        %510 = vmatpush1.bf16.msra.mxu0 0
        %511 = vmatprep.subr.bf16.mxu0 0
        %512 = vmatpush1.bf16.msra.mxu0 0
        %513 = vmatprep.subr.bf16.mxu0 0
        %514 = vmatpush1.bf16.msra.mxu0 0
        %515 = vmatprep.subr.bf16.mxu0 0
        %516 = vmatpush1.bf16.msra.mxu0 0
        %517 = vmatprep.subr.bf16.mxu0 0
        %518 = vmatpush1.bf16.msra.mxu0 0
        %519 = vmatprep.mubr.bf16.mxu0 0
        %520 = vmatmul.mubr.bf16.gmra.mrb[0].mxu0 %v485
        %v521 = vpop.f32.mrb[0].mxu0
        %v522 = vadd.f32 %v471, %v521
        %v523 = vpop.f32.mrb[0].mxu0
        %v524 = vpop.f32.mrb[0].mxu0
        %v525 = vpop.f32.mrb[0].mxu0
        %526 = vdwg.mxu0
        %v527 = vmax.f32 %v522, 0.0
        %v528 = vld [vmem:[#allocation14 + $0x3] ss:$0 sm:$0xff]
        %v529 = vld [vmem:[#allocation14 + $0x4] ss:$0 sm:$0xff]
        %vm530 = vcmask 523264
        %v531 = vsel %vm530, %v527, 0.0
        %532 = vadd.xlane.f32.xlu0 %v531
        %v533 = vpop.xlane.xlu0 %532
        %v534 = vrcp.pop 64.0
        %v535 = vmul.f32 %v533, %v534
        %v536 = vsub.f32 %v527, %v535
        %v537 = vmul.f32 %v536, %v536
        %v538 = vsel %vm530, %v537, 0.0
        %539 = vadd.xlane.f32.xlu0 %v538
        %v540 = vpop.xlane.xlu0 %539
        %v541 = vmul.f32 %v540, %v534
        %v542 = vadd.f32 %v541, 1e-05
        %v543 = vrsqrt.pop %v542
        %v544 = vmul.f32 %v536, %v543
        %v545 = vmul.f32 %v544, %v528
        %v546 = vadd.f32 %v545, %v529
        %v547 = vpack.c.bf16 %v546, %v546
        %v548 = vld [vmem:[#allocation8] sm:$0xf]
        %v549 = vld [vmem:[#allocation8 + $0x4] sm:$0xf]
        %v550 = vld [vmem:[#allocation8 + $0x8] sm:$0xf]
        %v551 = vld [vmem:[#allocation8 + $0xc] sm:$0xf]
        %v552 = vld [vmem:[#allocation8 + $0x10] sm:$0xf]
        %v553 = vld [vmem:[#allocation8 + $0x14] sm:$0xf]
        %v554 = vld [vmem:[#allocation8 + $0x18] sm:$0xf]
        %v555 = vld [vmem:[#allocation8 + $0x1c] sm:$0xf]
        %v556 = vld [vmem:[#allocation14 + $0x5] ss:$0 sm:$0xff]
        %v565 = vunpack.c.l.b16 %v548
        %v566 = vunpack.c.l.b16 %v549
        %v567 = vunpack.c.l.b16 %v550
        %v568 = vunpack.c.l.b16 %v551
        %v569 = vunpack.c.l.b16 %v552
        %v570 = vunpack.c.l.b16 %v553
        %v571 = vunpack.c.l.b16 %v554
        %v572 = vunpack.c.l.b16 %v555
        %v573 = vpack.c.b16 %v566, %v565
        %v574 = vpack.c.b16 %v568, %v567
        %v575 = vpack.c.b16 %v570, %v569
        %v576 = vpack.c.b16 %v572, %v571
        %v582 = vsel %vm530, %v547, 0
        %584 = vmatprep.subr.bf16.mxu0 0
        %585 = vmatpush1.bf16.msra.mxu0 %v573
        %586 = vmatprep.subr.bf16.mxu0 0
        %587 = vmatpush1.bf16.msra.mxu0 %v574
        %588 = vmatprep.subr.bf16.mxu0 0
        %589 = vmatpush1.bf16.msra.mxu0 %v575
        %590 = vmatprep.subr.bf16.mxu0 0
        %591 = vmatpush1.bf16.msra.mxu0 %v576
        %592 = vmatprep.subr.bf16.mxu0 0
        %593 = vmatpush1.bf16.msra.mxu0 0
        %594 = vmatprep.subr.bf16.mxu0 0
        %595 = vmatpush1.bf16.msra.mxu0 0
        %596 = vmatprep.subr.bf16.mxu0 0
        %597 = vmatpush1.bf16.msra.mxu0 0
        %598 = vmatprep.subr.bf16.mxu0 0
        %599 = vmatpush1.bf16.msra.mxu0 0
        %600 = vmatprep.subr.bf16.mxu0 0
        %601 = vmatpush1.bf16.msra.mxu0 0
        %602 = vmatprep.subr.bf16.mxu0 0
        %603 = vmatpush1.bf16.msra.mxu0 0
        %604 = vmatprep.subr.bf16.mxu0 0
        %605 = vmatpush1.bf16.msra.mxu0 0
        %606 = vmatprep.subr.bf16.mxu0 0
        %607 = vmatpush1.bf16.msra.mxu0 0
        %608 = vmatprep.subr.bf16.mxu0 0
        %609 = vmatpush1.bf16.msra.mxu0 0
        %610 = vmatprep.subr.bf16.mxu0 0
        %611 = vmatpush1.bf16.msra.mxu0 0
        %612 = vmatprep.subr.bf16.mxu0 0
        %613 = vmatpush1.bf16.msra.mxu0 0
        %614 = vmatprep.subr.bf16.mxu0 0
        %615 = vmatpush1.bf16.msra.mxu0 0
        %616 = vmatprep.mubr.bf16.mxu0 0
        %617 = vmatmul.mubr.bf16.gmra.mrb[0].mxu0 %v582
        %v618 = vpop.f32.mrb[0].mxu0
        %v619 = vadd.f32 %v556, %v618
        %v620 = vpop.f32.mrb[0].mxu0
        %v621 = vpop.f32.mrb[0].mxu0
        %v622 = vpop.f32.mrb[0].mxu0
        %623 = vdwg.mxu0
        %v624 = vmax.f32 %v619, 0.0
        %v625 = vld [vmem:[#allocation14 + $0x6] ss:$0 sm:$0xff]
        %v626 = vld [vmem:[#allocation14 + $0x7] ss:$0 sm:$0xff]
        %v627 = vsel %vm530, %v624, 0.0
        %628 = vadd.xlane.f32.xlu0 %v627
        %v629 = vpop.xlane.xlu0 %628
        %v630 = vmul.f32 %v629, %v534
        %v631 = vsub.f32 %v624, %v630
        %v632 = vmul.f32 %v631, %v631
        %v633 = vsel %vm530, %v632, 0.0
        %634 = vadd.xlane.f32.xlu0 %v633
        %v635 = vpop.xlane.xlu0 %634
        %v636 = vmul.f32 %v635, %v534
        %v637 = vadd.f32 %v636, 1e-05
        %v638 = vrsqrt.pop %v637
        %v639 = vmul.f32 %v631, %v638
        %v640 = vmul.f32 %v639, %v625
        %v641 = vadd.f32 %v640, %v626
        %v642 = vld [vmem:[%s383] sm:$0xff]
        %v643 = vpack.c.bf16 %v641, %v641
        %v644 = vld [vmem:[#allocation10] sm:$0xff]
        %v645 = vld [vmem:[#allocation10 + $0x8] sm:$0xff]
        %v646 = vld [vmem:[#allocation10 + $0x10] sm:$0xff]
        %v647 = vld [vmem:[#allocation10 + $0x18] sm:$0xff]
        %v648 = vld [vmem:[#allocation10 + $0x20] sm:$0xff]
        %v649 = vld [vmem:[#allocation10 + $0x28] sm:$0xff]
        %v650 = vld [vmem:[#allocation10 + $0x30] sm:$0xff]
        %v651 = vld [vmem:[#allocation10 + $0x38] sm:$0xff]
        %s652 = scalar_lea.vmem [#allocation14], 16
        %v653 = vld [vmem:[%s652] ss:$8 sm:$0x3]
        %v655 = vlaneseq
        %v656 = vshrl.u32 %v655, 7
        %v657 = vsub.s32 0, %v656
        %v658 = vrot.slane %v653, %v657
        %v659 = vlaneseq
        %v660 = vshrl.u32 %v659, 7
        %v661 = vsub.s32 1, %v660
        %v662 = vrot.slane %v653, %v661
        %v673 = vunpack.c.l.b16 %v644
        %v674 = vunpack.c.h.b16 %v644
        %v675 = vunpack.c.l.b16 %v645
        %v676 = vunpack.c.h.b16 %v645
        %v677 = vunpack.c.l.b16 %v646
        %v678 = vunpack.c.h.b16 %v646
        %v679 = vunpack.c.l.b16 %v647
        %v680 = vunpack.c.h.b16 %v647
        %v681 = vunpack.c.l.b16 %v648
        %v682 = vunpack.c.h.b16 %v648
        %v683 = vunpack.c.l.b16 %v649
        %v684 = vunpack.c.h.b16 %v649
        %v685 = vunpack.c.l.b16 %v650
        %v686 = vunpack.c.h.b16 %v650
        %v687 = vunpack.c.l.b16 %v651
        %v688 = vunpack.c.h.b16 %v651
        %v689 = vpack.c.b16 %v675, %v673
        %v690 = vpack.c.b16 %v676, %v674
        %v691 = vpack.c.b16 %v679, %v677
        %v692 = vpack.c.b16 %v680, %v678
        %v693 = vpack.c.b16 %v683, %v681
        %v694 = vpack.c.b16 %v684, %v682
        %v695 = vpack.c.b16 %v687, %v685
        %v696 = vpack.c.b16 %v688, %v686
        %v706 = vsel %vm530, %v643, 0
        %708 = vmatprep.subr.bf16.mxu0 %v690
        %709 = vmatpush1.bf16.msra.mxu0 %v689
        %710 = vmatprep.subr.bf16.mxu0 %v692
        %711 = vmatpush1.bf16.msra.mxu0 %v691
        %712 = vmatprep.subr.bf16.mxu0 %v694
        %713 = vmatpush1.bf16.msra.mxu0 %v693
        %714 = vmatprep.subr.bf16.mxu0 %v696
        %715 = vmatpush1.bf16.msra.mxu0 %v695
        %716 = vmatprep.subr.bf16.mxu0 0
        %717 = vmatpush1.bf16.msra.mxu0 0
        %718 = vmatprep.subr.bf16.mxu0 0
        %719 = vmatpush1.bf16.msra.mxu0 0
        %720 = vmatprep.subr.bf16.mxu0 0
        %721 = vmatpush1.bf16.msra.mxu0 0
        %722 = vmatprep.subr.bf16.mxu0 0
        %723 = vmatpush1.bf16.msra.mxu0 0
        %724 = vmatprep.subr.bf16.mxu0 0
        %725 = vmatpush1.bf16.msra.mxu0 0
        %726 = vmatprep.subr.bf16.mxu0 0
        %727 = vmatpush1.bf16.msra.mxu0 0
        %728 = vmatprep.subr.bf16.mxu0 0
        %729 = vmatpush1.bf16.msra.mxu0 0
        %730 = vmatprep.subr.bf16.mxu0 0
        %731 = vmatpush1.bf16.msra.mxu0 0
        %732 = vmatprep.subr.bf16.mxu0 0
        %733 = vmatpush1.bf16.msra.mxu0 0
        %734 = vmatprep.subr.bf16.mxu0 0
        %735 = vmatpush1.bf16.msra.mxu0 0
        %736 = vmatprep.subr.bf16.mxu0 0
        %737 = vmatpush1.bf16.msra.mxu0 0
        %738 = vmatprep.subr.bf16.mxu0 0
        %739 = vmatpush1.bf16.msra.mxu0 0
        %740 = vmatprep.mubr.bf16.mxu0 0
        %741 = vmatmul.mubr.bf16.gmra.mrb[0].mxu0 %v706
        %v742 = vpop.f32.mrb[0].mxu0
        %v743 = vadd.f32 %v658, %v742
        %v744 = vpop.f32.mrb[0].mxu0
        %v745 = vadd.f32 %v662, %v744
        %v746 = vpop.f32.mrb[0].mxu0
        %v747 = vpop.f32.mrb[0].mxu0
        %748 = vdwg.mxu0
        %v749 = vpack.c.bf16 %v642, %v642
        %v750 = vld [vmem:[#allocation11] sm:$0xff]
        %v751 = vld [vmem:[#allocation11 + $0x8] sm:$0xff]
        %v752 = vld [vmem:[#allocation11 + $0x10] sm:$0xff]
        %v753 = vld [vmem:[#allocation11 + $0x18] sm:$0xff]
        %v754 = vld [vmem:[#allocation11 + $0x20] sm:$0xff]
        %v755 = vld [vmem:[#allocation11 + $0x28] sm:$0xff]
        %v756 = vld [vmem:[#allocation11 + $0x30] sm:$0xff]
        %v757 = vld [vmem:[#allocation11 + $0x38] sm:$0xff]
        %s758 = scalar_lea.vmem [#allocation14], 17
        %v759 = vld [vmem:[%s758] ss:$8 sm:$0x3]
        %v761 = vlaneseq
        %v762 = vshrl.u32 %v761, 7
        %v763 = vsub.s32 0, %v762
        %v764 = vrot.slane %v759, %v763
        %v765 = vlaneseq
        %v766 = vshrl.u32 %v765, 7
        %v767 = vsub.s32 1, %v766
        %v768 = vrot.slane %v759, %v767
        %v779 = vunpack.c.l.b16 %v750
        %v780 = vunpack.c.h.b16 %v750
        %v781 = vunpack.c.l.b16 %v751
        %v782 = vunpack.c.h.b16 %v751
        %v783 = vunpack.c.l.b16 %v752
        %v784 = vunpack.c.h.b16 %v752
        %v785 = vunpack.c.l.b16 %v753
        %v786 = vunpack.c.h.b16 %v753
        %v787 = vunpack.c.l.b16 %v754
        %v788 = vunpack.c.h.b16 %v754
        %v789 = vunpack.c.l.b16 %v755
        %v790 = vunpack.c.h.b16 %v755
        %v791 = vunpack.c.l.b16 %v756
        %v792 = vunpack.c.h.b16 %v756
        %v793 = vunpack.c.l.b16 %v757
        %v794 = vunpack.c.h.b16 %v757
        %v795 = vpack.c.b16 %v781, %v779
        %v796 = vpack.c.b16 %v782, %v780
        %v797 = vpack.c.b16 %v785, %v783
        %v798 = vpack.c.b16 %v786, %v784
        %v799 = vpack.c.b16 %v789, %v787
        %v800 = vpack.c.b16 %v790, %v788
        %v801 = vpack.c.b16 %v793, %v791
        %v802 = vpack.c.b16 %v794, %v792
        %v812 = vsel %vm530, %v749, 0
        %814 = vmatprep.subr.bf16.mxu0 %v796
        %815 = vmatpush1.bf16.msra.mxu0 %v795
        %816 = vmatprep.subr.bf16.mxu0 %v798
        %817 = vmatpush1.bf16.msra.mxu0 %v797
        %818 = vmatprep.subr.bf16.mxu0 %v800
        %819 = vmatpush1.bf16.msra.mxu0 %v799
        %820 = vmatprep.subr.bf16.mxu0 %v802
        %821 = vmatpush1.bf16.msra.mxu0 %v801
        %822 = vmatprep.subr.bf16.mxu0 0
        %823 = vmatpush1.bf16.msra.mxu0 0
        %824 = vmatprep.subr.bf16.mxu0 0
        %825 = vmatpush1.bf16.msra.mxu0 0
        %826 = vmatprep.subr.bf16.mxu0 0
        %827 = vmatpush1.bf16.msra.mxu0 0
        %828 = vmatprep.subr.bf16.mxu0 0
        %829 = vmatpush1.bf16.msra.mxu0 0
        %830 = vmatprep.subr.bf16.mxu0 0
        %831 = vmatpush1.bf16.msra.mxu0 0
        %832 = vmatprep.subr.bf16.mxu0 0
        %833 = vmatpush1.bf16.msra.mxu0 0
        %834 = vmatprep.subr.bf16.mxu0 0
        %835 = vmatpush1.bf16.msra.mxu0 0
        %836 = vmatprep.subr.bf16.mxu0 0
        %837 = vmatpush1.bf16.msra.mxu0 0
        %838 = vmatprep.subr.bf16.mxu0 0
        %839 = vmatpush1.bf16.msra.mxu0 0
        %840 = vmatprep.subr.bf16.mxu0 0
        %841 = vmatpush1.bf16.msra.mxu0 0
        %842 = vmatprep.subr.bf16.mxu0 0
        %843 = vmatpush1.bf16.msra.mxu0 0
        %844 = vmatprep.subr.bf16.mxu0 0
        %845 = vmatpush1.bf16.msra.mxu0 0
        %846 = vmatprep.mubr.bf16.mxu0 0
        %847 = vmatmul.mubr.bf16.gmra.mrb[0].mxu0 %v812
        %v848 = vpop.f32.mrb[0].mxu0
        %v849 = vadd.f32 %v764, %v848
        %v850 = vpop.f32.mrb[0].mxu0
        %v851 = vadd.f32 %v768, %v850
        %v852 = vpop.f32.mrb[0].mxu0
        %v853 = vpop.f32.mrb[0].mxu0
        %854 = vdwg.mxu0
        %v855 = vadd.f32 %v743, %v849
        %v856 = vxor.u32 %v855, 2147483648
        %v857 = vmul.f32 %v856, 1.442695
        %v858 = vpow.pop %v857
        %v859 = vadd.f32 %v858, 1.0
        %v860 = vrcp.pop %v859
        %v861 = vmul.f32 1.0, %v860
        %v862 = vmul.f32 %v861, %v851
        %v863 = vadd.f32 %v745, %v862
        %v864 = vtanh.pop %v863
        %v865 = vsub.f32 1.0, %v861
        %867 = vrot.lane.b32.xlu0 %v864, 64
        %v868 = vpop.permute.xlu0 %867
        %v870 = vmul.f32 %v865, %v868
        %872 = vrot.lane.b32.xlu0 %v642, 64
        %v873 = vpop.permute.xlu0 %872
        %v875 = vmul.f32 %v861, %v873
        %v876 = vadd.f32 %v870, %v875
        %v877 = vld [vmem:[#allocation14 + $0x12] ss:$0 sm:$0xff]
        %v878 = vld [vmem:[#allocation14 + $0x13] ss:$0 sm:$0xff]
        %880 = vrot.lane.b32.xlu0 %v876, 64
        %v881 = vpop.permute.xlu0 %880
        %v883 = vsel %vm530, %v881, 0.0
        %884 = vadd.xlane.f32.xlu0 %v883
        %v885 = vpop.xlane.xlu0 %884
        %v886 = vmul.f32 %v885, %v534
        %v887 = vsub.f32 %v876, %v886
        %v888 = vmul.f32 %v887, %v887
        %890 = vrot.lane.b32.xlu0 %v888, 64
        %v891 = vpop.permute.xlu0 %890
        %v893 = vsel %vm530, %v891, 0.0
        %894 = vadd.xlane.f32.xlu0 %v893
        %v895 = vpop.xlane.xlu0 %894
        %v896 = vmul.f32 %v895, %v534
        %v897 = vadd.f32 %v896, 1e-05
        %v898 = vrsqrt.pop %v897
        %v899 = vmul.f32 %v887, %v898
        %901 = vrot.lane.b32.xlu0 %v877, 64
        %v902 = vpop.permute.xlu0 %901
        %v904 = vmul.f32 %v899, %v902
        %906 = vrot.lane.b32.xlu0 %v878, 64
        %v907 = vpop.permute.xlu0 %906
        %v909 = vadd.f32 %v904, %v907
        %v910 = vpack.c.bf16 %v909, %v909
        %v911 = vld [vmem:[#allocation13] sm:$0xf]
        %v912 = vld [vmem:[#allocation13 + $0x4] sm:$0xf]
        %v913 = vld [vmem:[#allocation13 + $0x8] sm:$0xf]
        %v914 = vld [vmem:[#allocation13 + $0xc] sm:$0xf]
        %v915 = vld [vmem:[#allocation13 + $0x10] sm:$0xf]
        %v916 = vld [vmem:[#allocation13 + $0x14] sm:$0xf]
        %v917 = vld [vmem:[#allocation13 + $0x18] sm:$0xf]
        %v918 = vld [vmem:[#allocation13 + $0x1c] sm:$0xf]
        %v919 = vld [vmem:[#allocation14 + $0x14] ss:$0 sm:$0xff]
        %921 = vrot.lane.b32.xlu0 %v910, 64
        %v922 = vpop.permute.xlu0 %921
        %v931 = vunpack.c.l.b16 %v911
        %v932 = vunpack.c.l.b16 %v912
        %v933 = vunpack.c.l.b16 %v913
        %v934 = vunpack.c.l.b16 %v914
        %v935 = vunpack.c.l.b16 %v915
        %v936 = vunpack.c.l.b16 %v916
        %v937 = vunpack.c.l.b16 %v917
        %v938 = vunpack.c.l.b16 %v918
        %v939 = vpack.c.b16 %v932, %v931
        %v940 = vpack.c.b16 %v934, %v933
        %v941 = vpack.c.b16 %v936, %v935
        %v942 = vpack.c.b16 %v938, %v937
        %v948 = vsel %vm530, %v922, 0
        %950 = vmatprep.subr.bf16.mxu0 0
        %951 = vmatpush1.bf16.msra.mxu0 %v939
        %952 = vmatprep.subr.bf16.mxu0 0
        %953 = vmatpush1.bf16.msra.mxu0 %v940
        %954 = vmatprep.subr.bf16.mxu0 0
        %955 = vmatpush1.bf16.msra.mxu0 %v941
        %956 = vmatprep.subr.bf16.mxu0 0
        %957 = vmatpush1.bf16.msra.mxu0 %v942
        %958 = vmatprep.subr.bf16.mxu0 0
        %959 = vmatpush1.bf16.msra.mxu0 0
        %960 = vmatprep.subr.bf16.mxu0 0
        %961 = vmatpush1.bf16.msra.mxu0 0
        %962 = vmatprep.subr.bf16.mxu0 0
        %963 = vmatpush1.bf16.msra.mxu0 0
        %964 = vmatprep.subr.bf16.mxu0 0
        %965 = vmatpush1.bf16.msra.mxu0 0
        %966 = vmatprep.subr.bf16.mxu0 0
        %967 = vmatpush1.bf16.msra.mxu0 0
        %968 = vmatprep.subr.bf16.mxu0 0
        %969 = vmatpush1.bf16.msra.mxu0 0
        %970 = vmatprep.subr.bf16.mxu0 0
        %971 = vmatpush1.bf16.msra.mxu0 0
        %972 = vmatprep.subr.bf16.mxu0 0
        %973 = vmatpush1.bf16.msra.mxu0 0
        %974 = vmatprep.subr.bf16.mxu0 0
        %975 = vmatpush1.bf16.msra.mxu0 0
        %976 = vmatprep.subr.bf16.mxu0 0
        %977 = vmatpush1.bf16.msra.mxu0 0
        %978 = vmatprep.subr.bf16.mxu0 0
        %979 = vmatpush1.bf16.msra.mxu0 0
        %980 = vmatprep.subr.bf16.mxu0 0
        %981 = vmatpush1.bf16.msra.mxu0 0
        %982 = vmatprep.mubr.bf16.mxu0 0
        %983 = vmatmul.mubr.bf16.gmra.mrb[0].mxu0 %v948
        %v984 = vpop.f32.mrb[0].mxu0
        %v985 = vadd.f32 %v919, %v984
        %v986 = vpop.f32.mrb[0].mxu0
        %v987 = vpop.f32.mrb[0].mxu0
        %v988 = vpop.f32.mrb[0].mxu0
        %989 = vdwg.mxu0
        %991 = vrot.lane.b32.xlu0 %v985, 64
        %v992 = vpop.permute.xlu0 %991
        %v994 = vsel %vm530, %v881, %v992
        %995 = vst [vmem:[%s444] sm:$0xff] %v994
        %s996 = sand.u32 %s217, 1
        %s997 = scalar_lea.sflag [#allocation4], %s996
        %s998 = sand.u32 %s217, 1
        %s999 = smul.addr %s998, 8
        %s1000 = scalar_lea.vmem [#allocation16], %s999
        // Predicated region
        $region85: #{tpu_custom_call.1} parent=51 // pred_check
          %p1001 = pneg %p227
        $region86: #{tpu_custom_call.1} parent=51 // pred_check_branch
          %1003 = sbr.rel (%p1001) target = $region88
        $region87: #{tpu_custom_call.1} parent=51 // pred_region
          %s1005 = ssub.s32 128, 128
          %1006 = vsyncadd %s997, %s1005
          %s1007 = smul.addr %s31, 128
          %s1008 = scalar_lea.hbm %s8, %s1007
          %s1010 = sshll.u32 %s1000, 4
          %s1011 = int_to_ptr.vmem [resolvable:$true] %s1010
          %1013 = dma.vmem_to_hbm [thread:$0]  %s1011, 128, %s1008, %s997
        $region88: #{tpu_custom_call.1} parent=51 // pred_fallthru
          _
      $region52: #{tpu_custom_call.1} parent=5 // pred_fallthru
        _
      %p1014 = scmp.le.s32.totalorder 2, %s26
      // Predicated region
      $region89: #{tpu_custom_call.1} parent=5 // pred_check
        %p1015 = pneg %p1014
      $region90: #{tpu_custom_call.1} parent=5 // pred_check_branch
        %1017 = sbr.rel (%p1015) target = $region92
      $region91: #{tpu_custom_call.1} parent=5 // pred_region
        %s1018 = ssub.s32 %s26, 2
        // Predicated region
        $region93: #{tpu_custom_call.1} parent=91 // pred_check
          %p1019 = pneg %p233
        $region94: #{tpu_custom_call.1} parent=91 // pred_check_branch
          %1021 = sbr.rel (%p1019) target = $region96
        $region95: #{tpu_custom_call.1} parent=91 // pred_region
          %s1022 = sand.u32 %s218, 1
          %s1023 = scalar_lea.sflag [#allocation4], %s1022
          %s1024 = sand.u32 %s218, 1
          %s1025 = smul.addr %s1024, 8
          %s1026 = scalar_lea.vmem [#allocation16], %s1025
          %1027 = dma.done %s1023, 128
        $region96: #{tpu_custom_call.1} parent=91 // pred_fallthru
          _
      $region92: #{tpu_custom_call.1} parent=5 // pred_fallthru
        _
    $region6: #{tpu_custom_call.1} parent=1 // loop_footer
      %s30 = sadd.s32 1, %s26
    $region7: #{tpu_custom_call.1} parent=1 // loop_footer_branch
      %25 = sbr.rel target = $region3
    $region8: #{tpu_custom_call.1} parent=1 // loop_exit
      _
    %1028 = vsyncpa [#allocation3], 1
    %s1029 = scalar_lea.sflag [#allocation3], 1
    %1030 = vsyncpa %s1029, 1
    %1031 = vsyncpa [#allocation6], 1
    %s1032 = scalar_lea.sflag [#allocation6], 1
    %1033 = vsyncpa %s1032, 1
    %1034 = vsyncpa [#allocation9], 1
    %1035 = vsyncpa [#allocation12], 1
    %1036 = vsyncpa [#allocation15], 1
    %1037 = vsyncpa [#allocation4], 1
    %s1038 = scalar_lea.sflag [#allocation4], 1
    %1039 = vsyncpa %s1038, 1

</llo_original>
